<compile_context>
chip_gen: v5e
topology: v5e:2x2
jax: 0.10.0
libtpu: 0.0.40
codegen_flags: <defaults>
</compile_context>

<pallas_src>
import jax
import jax.numpy as jnp
from jax.experimental import pallas as pl
from jax.experimental.pallas import tpu as pltpu


def _round_up(x: int, m: int) -> int:
    return (x + m - 1) // m * m


def _vmem_capacity_bytes() -> int:
    try:
        info = pltpu.get_tpu_info()
        cap = getattr(info, "vmem_capacity_bytes", None)
        if cap:
            return int(cap)
    except Exception:
        pass
    return 64 * 1024 * 1024  # conservative: v7x per-TC VMEM


def _clamp_vmem(footprint_bytes: int, cap_bytes: int) -> int:
    # footprint + headroom for compiler scratch, never below the default scoped
    # limit, never above ~85% of physical VMEM for this generation.
    return int(min(max(footprint_bytes + (8 << 20), 32 << 20), int(0.85 * cap_bytes)))


def _pick_hidden_block(H_pad: int, D_pad: int, wbytes: int, budget_bytes: int) -> int:
    """Largest TH (multiple of 128 dividing H_pad) whose streamed chunks fit budget."""
    nb = H_pad // 128
    best = 128
    for k in range(1, nb + 1):
        if nb % k:
            continue
        TH = k * 128
        chunk = 2 * (D_pad * TH + TH * H_pad) * wbytes  # double-buffered w1/w2 chunks
        if chunk <= budget_bytes:
            best = TH
    return best


# --------------------------------------------------------------------------- kernels
def mlp_kernel(x_ref, w1_ref, b1_ref, w2_ref, b2_ref, w3_ref, b3_ref, o_ref):
    # Cast the streamed f32 batch tile to the weight dtype in-register (cheap VPU op,
    # hidden under the MXU) rather than paying a separate HBM cast pass per call.
    x = x_ref[...].astype(w1_ref.dtype)

    # fc1 + ReLU (MXU matmul, f32 accumulation; bias added on the VPU afterwards).
    h1 = b1_ref[...] + jnp.dot(x, w1_ref[...], preferred_element_type=jnp.float32)
    h1 = jnp.maximum(h1, 0.0)

    # fc2 + ReLU
    h2 = b2_ref[...] + jnp.dot(h1.astype(w2_ref.dtype), w2_ref[...],
                               preferred_element_type=jnp.float32)
    h2 = jnp.maximum(h2, 0.0)

    # fc3 (no activation)
    out = b3_ref[...] + jnp.dot(h2.astype(w3_ref.dtype), w3_ref[...],
                                preferred_element_type=jnp.float32)
    o_ref[...] = out.astype(o_ref.dtype)


def mlp_kernel_htiled(x_ref, w1_ref, b1_ref, w2_ref, b2_ref, w3_ref, b3_ref,
                      o_ref, acc_ref):
    """H-tiled path: grid = (batch tiles, H chunks). acc_ref holds fc2 pre-activation."""
    h = pl.program_id(1)

    @pl.when(h == 0)
    def _():
        acc_ref[...] = jnp.zeros_like(acc_ref)

    x = x_ref[...].astype(w1_ref.dtype)

    # fc1 chunk: (TB, TH), then partial fc2 accumulate into (TB, H_pad) f32 scratch.
    h1 = b1_ref[...] + jnp.dot(x, w1_ref[...], preferred_element_type=jnp.float32)
    h1 = jnp.maximum(h1, 0.0)
    acc_ref[...] += jnp.dot(h1.astype(w2_ref.dtype), w2_ref[...],
                            preferred_element_type=jnp.float32)

    @pl.when(h == pl.num_programs(1) - 1)
    def _():
        h2 = jnp.maximum(acc_ref[...] + b2_ref[...], 0.0)
        out = b3_ref[...] + jnp.dot(h2.astype(w3_ref.dtype), w3_ref[...],
                                    preferred_element_type=jnp.float32)
        o_ref[...] = out.astype(o_ref.dtype)


# --------------------------------------------------------------------------- wrapper
def prepare_params(params, *, weight_dtype=None):
    """Pad feature dims to multiples of 128 (lane-dense) and optionally cast to bf16.

    Call ONCE outside the per-forward hot path: padding/casting w2 alone is a full
    HBM read+write over H^2 floats, which can exceed the kernel's own runtime if
    repeated every call. Biases stay f32 (cheap f32 epilogue, v5e-friendly).
    """
    w1, b1, w2, b2, w3, b3 = (params[k] for k in ("w1", "b1", "w2", "b2", "w3", "b3"))
    D_in, H = w1.shape
    N = w3.shape[1]
    D_pad, H_pad, N_pad = (_round_up(d, 128) for d in (D_in, H, N))
    wdt = jnp.float32 if weight_dtype is None else weight_dtype

    def pad2(a, rows, cols, dtype):
        a = jnp.pad(a, ((0, rows - a.shape[0]), (0, cols - a.shape[1])))
        return a.astype(dtype)

    return {
        "w1": pad2(w1, D_pad, H_pad, wdt),
        "w2": pad2(w2, H_pad, H_pad, wdt),
        "w3": pad2(w3, H_pad, N_pad, wdt),
        "b1": pad2(b1, 1, H_pad, jnp.float32),
        "b2": pad2(b2, 1, H_pad, jnp.float32),
        "b3": pad2(b3, 1, N_pad, jnp.float32),
        "dims": (int(D_in), int(H), int(N)),
    }


def mlp_forward(x, prepared, *, block_b=256, hidden_block=None, out_dtype=jnp.float32):
    """x: (B, input_dim) f32. prepared: output of prepare_params()."""
    w1p, b1p, w2p, b2p, w3p, b3p = (prepared[k]
                                    for k in ("w1", "b1", "w2", "b2", "w3", "b3"))
    D_in, H, N = prepared["dims"]
    D_pad, H_pad = w1p.shape
    N_pad = w3p.shape[1]
    wbytes = jnp.dtype(w1p.dtype).itemsize
    obytes = jnp.dtype(out_dtype).itemsize

    B = x.shape[0]
    # TB: sublane-aligned (16 for packed bf16 weights, 8 for f32); when the whole
    # batch fits in one big tile, split into >=2 tiles so both v7x TCs get work.
    align = 16 if wbytes < 4 else 8
    if B > block_b:
        TB = block_b
    elif B >= 128:
        TB = _round_up(-(-B // 2), align)
    else:
        TB = _round_up(B, align)
    B_pad = _round_up(B, TB)

    # x padding is per-call (batch-dependent); x stays f32, cast happens in-kernel.
    xp = x if (B_pad, D_pad) == x.shape else jnp.pad(
        x, ((0, B_pad - B), (0, D_pad - D_in)))

    vmem_cap = _vmem_capacity_bytes()
    resident_bytes = sum(int(a.size) * a.dtype.itemsize
                         for a in (w1p, w2p, w3p, b1p, b2p, b3p))

    # Choose path: fully-resident weights (small/medium H) vs H-tiled streaming.
    if hidden_block is None:
        if resident_bytes > int(0.45 * vmem_cap):
            hidden_block = _pick_hidden_block(H_pad, D_pad, wbytes,
                                              int(0.30 * vmem_cap))
        else:
            hidden_block = H_pad
    hidden_block = min(hidden_block, H_pad)
    assert H_pad % hidden_block == 0, "hidden_block must divide padded hidden dim"
    n_h = H_pad // hidden_block

    flops = 2 * B_pad * (D_pad * H_pad + H_pad * H_pad + H_pad * N_pad)

    def resident(a):
        # Constant index_map -> stays VMEM-resident; Buffered(1) keeps a single copy
        # instead of the default 2-deep pipeline buffers (halves resident VMEM).
        return pl.BlockSpec(a.shape, lambda *_: (0,) * a.ndim,
                            pipeline_mode=pl.Buffered(1))

    if n_h == 1:
        footprint = (resident_bytes
                     + 2 * TB * D_pad * 4          # double-buffered streamed x (f32)
                     + 2 * TB * N_pad * obytes)    # double-buffered output tile
        bytes_accessed = (B_pad * D_pad * 4 + resident_bytes + B_pad * N_pad * obytes)

        out = pl.pallas_call(
            mlp_kernel,
            out_shape=jax.ShapeDtypeStruct((B_pad, N_pad), out_dtype),
            grid=(B_pad // TB,),
            in_specs=[
                pl.BlockSpec((TB, D_pad), lambda i: (i, 0)),   # streamed batch tile
                resident(w1p), resident(b1p),
                resident(w2p), resident(b2p),
                resident(w3p), resident(b3p),
            ],
            out_specs=pl.BlockSpec((TB, N_pad), lambda i: (i, 0)),
            compiler_params=pltpu.CompilerParams(
                dimension_semantics=("parallel",),
                vmem_limit_bytes=_clamp_vmem(footprint, vmem_cap),
            ),
            cost_estimate=pl.CostEstimate(flops=flops, transcendentals=0,
                                          bytes_accessed=int(bytes_accessed)),
        )(xp, w1p, b1p, w2p, b2p, w3p, b3p)
    else:
        TH = hidden_block
        small_resident = sum(int(a.size) * a.dtype.itemsize for a in (w3p, b2p, b3p))
        footprint = (small_resident
                     + 2 * TB * D_pad * 4
                     + 2 * (D_pad * TH + TH * H_pad) * wbytes + 2 * TH * 4
                     + 2 * TB * N_pad * obytes
                     + TB * H_pad * 4)             # fc2 accumulator scratch
        n_btiles = B_pad // TB
        bytes_accessed = (B_pad * D_pad * 4 + small_resident + B_pad * N_pad * obytes
                          + n_btiles * (D_pad * H_pad + H_pad * H_pad) * wbytes)

        out = pl.pallas_call(
            mlp_kernel_htiled,
            out_shape=jax.ShapeDtypeStruct((B_pad, N_pad), out_dtype),
            grid=(n_btiles, n_h),
            in_specs=[
                pl.BlockSpec((TB, D_pad), lambda i, h: (i, 0)),
                pl.BlockSpec((D_pad, TH), lambda i, h: (0, h)),   # w1 column chunk
                pl.BlockSpec((1, TH), lambda i, h: (0, h)),        # b1 chunk
                pl.BlockSpec((TH, H_pad), lambda i, h: (h, 0)),    # w2 row chunk
                resident(b2p), resident(w3p), resident(b3p),
            ],
            out_specs=pl.BlockSpec((TB, N_pad), lambda i, h: (i, 0)),
            scratch_shapes=[pltpu.VMEM((TB, H_pad), jnp.float32)],
            compiler_params=pltpu.CompilerParams(
                dimension_semantics=("parallel", "arbitrary"),
                vmem_limit_bytes=_clamp_vmem(footprint, vmem_cap),
            ),
            cost_estimate=pl.CostEstimate(flops=flops, transcendentals=0,
                                          bytes_accessed=int(bytes_accessed)),
        )(xp, w1p, b1p, w2p, b2p, w3p, b3p)

    if B_pad == B and N_pad == N:
        return out
    # NOTE: this slice is an extra HBM pass when padding was added; prefer letting it
    # fuse into the consumer (or pick shapes where no padding is needed).
    return out[:B, :N]


def init_params(key, input_dim, hidden_dim, num_clusters):
    """Deterministic init mimicking PyTorch nn.Linear: U(-1/sqrt(fan_in), +1/sqrt(fan_in))."""
    ks = jax.random.split(key, 6)

    def linear(kw, kb, fan_in, fan_out):
        bound = 1.0 / jnp.sqrt(fan_in)
        # Stored as (in, out) so the kernel does x @ W (equivalent to x @ W_pt.T).
        w = jax.random.uniform(kw, (fan_in, fan_out), jnp.float32, -bound, bound)
        b = jax.random.uniform(kb, (1, fan_out), jnp.float32, -bound, bound)
        return w, b

    w1, b1 = linear(ks[0], ks[1], input_dim, hidden_dim)
    w2, b2 = linear(ks[2], ks[3], hidden_dim, hidden_dim)
    w3, b3 = linear(ks[4], ks[5], hidden_dim, num_clusters)
    return {"w1": w1, "b1": b1, "w2": w2, "b2": b2, "w3": w3, "b3": b3}


if __name__ == "__main__":
    key = jax.random.PRNGKey(0)
    k_p1, k_x1, k_p2, k_x2 = jax.random.split(key, 4)

    def ref(x, p):
        h = jnp.maximum(x @ p["w1"] + p["b1"], 0.0)
        h = jnp.maximum(h @ p["w2"] + p["b2"], 0.0)
        return h @ p["w3"] + p["b3"]

    # Case 1: small shapes -> fully-resident single-grid-axis path.
    input_dim, hidden_dim, num_clusters, batch = 32, 64, 16, 8
    params = init_params(k_p1, input_dim, hidden_dim, num_clusters)
    prepped = prepare_params(params)               # pad/cast once, outside hot path
    x = jax.random.normal(k_x1, (batch, input_dim), jnp.float32)
    out = jax.block_until_ready(mlp_forward(x, prepped))
    assert out.shape == (batch, num_clusters)
    assert jnp.allclose(out, ref(x, params), atol=1e-4, rtol=1e-4), "mismatch (resident path)"

    # Case 2: force the H-tiled fallback path (used for large hidden dims on v7x).
    input_dim2, hidden_dim2, num_clusters2, batch2 = 48, 160, 10, 8
    params2 = init_params(k_p2, input_dim2, hidden_dim2, num_clusters2)
    prepped2 = prepare_params(params2)
    x2 = jax.random.normal(k_x2, (batch2, input_dim2), jnp.float32)
    out2 = jax.block_until_ready(mlp_forward(x2, prepped2, hidden_block=128))
    assert out2.shape == (batch2, num_clusters2)
    assert jnp.allclose(out2, ref(x2, params2), atol=1e-4, rtol=1e-4), "mismatch (H-tiled path)"

    print("KERNEL_OK")
</pallas_src>

<mosaic_0001>
module attributes {stable_mosaic.version = 11 : i64} {
  func.func @mlp_kernel(%arg0: i32, %arg1: memref<8x128xf32, #tpu.memory_space<vmem>>, %arg2: memref<128x128xf32, #tpu.memory_space<vmem>>, %arg3: memref<1x128xf32, #tpu.memory_space<vmem>>, %arg4: memref<128x128xf32, #tpu.memory_space<vmem>>, %arg5: memref<1x128xf32, #tpu.memory_space<vmem>>, %arg6: memref<128x128xf32, #tpu.memory_space<vmem>>, %arg7: memref<1x128xf32, #tpu.memory_space<vmem>>, %arg8: memref<8x128xf32, #tpu.memory_space<vmem>>) attributes {dimension_semantics = [#tpu.dimension_semantics<parallel>], iteration_bounds = array<i64: 1>, scalar_prefetch = 0 : i64, scratch_operands = 0 : i64, tpu.core_type = #tpu.core_type<tc>, window_params = [{transform_indices = @transform_0, window_bounds = array<i64: 8, 128>}, {pipeline_mode = #tpu.pipeline_mode<synchronous>, transform_indices = @transform_1, window_bounds = array<i64: 128, 128>}, {pipeline_mode = #tpu.pipeline_mode<synchronous>, transform_indices = @transform_2, window_bounds = array<i64: 1, 128>}, {pipeline_mode = #tpu.pipeline_mode<synchronous>, transform_indices = @transform_3, window_bounds = array<i64: 128, 128>}, {pipeline_mode = #tpu.pipeline_mode<synchronous>, transform_indices = @transform_4, window_bounds = array<i64: 1, 128>}, {pipeline_mode = #tpu.pipeline_mode<synchronous>, transform_indices = @transform_5, window_bounds = array<i64: 128, 128>}, {pipeline_mode = #tpu.pipeline_mode<synchronous>, transform_indices = @transform_6, window_bounds = array<i64: 1, 128>}, {transform_indices = @transform_7, window_bounds = array<i64: 8, 128>}]} {
    %c0 = arith.constant 0 : index
    %c0_0 = arith.constant 0 : index
    %0 = vector.load %arg1[%c0, %c0_0] : memref<8x128xf32, #tpu.memory_space<vmem>>, vector<8x128xf32>
    %c0_1 = arith.constant 0 : index
    %c0_2 = arith.constant 0 : index
    %1 = vector.load %arg3[%c0_1, %c0_2] : memref<1x128xf32, #tpu.memory_space<vmem>>, vector<1x128xf32>
    %c0_3 = arith.constant 0 : index
    %c0_4 = arith.constant 0 : index
    %2 = vector.load %arg2[%c0_3, %c0_4] : memref<128x128xf32, #tpu.memory_space<vmem>>, vector<128x128xf32>
    %cst = arith.constant dense<0.000000e+00> : vector<8x128xf32>
    %3 = tpu.matmul %0, %2, %cst {dimension_numbers = #tpu.dot_dimension_numbers<[1], [0], [0], [1], [0, 0, 1, 1], [], []>} : vector<8x128xf32>, vector<128x128xf32>, vector<8x128xf32> -> vector<8x128xf32>
    %4 = vector.broadcast %1 : vector<1x128xf32> to vector<8x128xf32>
    %5 = arith.addf %4, %3 : vector<8x128xf32>
    %cst_5 = arith.constant 0.000000e+00 : f32
    %6 = vector.broadcast %cst_5 : f32 to vector<8x128xf32>
    %7 = arith.maximumf %5, %6 : vector<8x128xf32>
    %c0_6 = arith.constant 0 : index
    %c0_7 = arith.constant 0 : index
    %8 = vector.load %arg5[%c0_6, %c0_7] : memref<1x128xf32, #tpu.memory_space<vmem>>, vector<1x128xf32>
    %c0_8 = arith.constant 0 : index
    %c0_9 = arith.constant 0 : index
    %9 = vector.load %arg4[%c0_8, %c0_9] : memref<128x128xf32, #tpu.memory_space<vmem>>, vector<128x128xf32>
    %cst_10 = arith.constant dense<0.000000e+00> : vector<8x128xf32>
    %10 = tpu.matmul %7, %9, %cst_10 {dimension_numbers = #tpu.dot_dimension_numbers<[1], [0], [0], [1], [0, 0, 1, 1], [], []>} : vector<8x128xf32>, vector<128x128xf32>, vector<8x128xf32> -> vector<8x128xf32>
    %11 = vector.broadcast %8 : vector<1x128xf32> to vector<8x128xf32>
    %12 = arith.addf %11, %10 : vector<8x128xf32>
    %cst_11 = arith.constant 0.000000e+00 : f32
    %13 = vector.broadcast %cst_11 : f32 to vector<8x128xf32>
    %14 = arith.maximumf %12, %13 : vector<8x128xf32>
    %c0_12 = arith.constant 0 : index
    %c0_13 = arith.constant 0 : index
    %15 = vector.load %arg7[%c0_12, %c0_13] : memref<1x128xf32, #tpu.memory_space<vmem>>, vector<1x128xf32>
    %c0_14 = arith.constant 0 : index
    %c0_15 = arith.constant 0 : index
    %16 = vector.load %arg6[%c0_14, %c0_15] : memref<128x128xf32, #tpu.memory_space<vmem>>, vector<128x128xf32>
    %cst_16 = arith.constant dense<0.000000e+00> : vector<8x128xf32>
    %17 = tpu.matmul %14, %16, %cst_16 {dimension_numbers = #tpu.dot_dimension_numbers<[1], [0], [0], [1], [0, 0, 1, 1], [], []>} : vector<8x128xf32>, vector<128x128xf32>, vector<8x128xf32> -> vector<8x128xf32>
    %18 = vector.broadcast %15 : vector<1x128xf32> to vector<8x128xf32>
    %19 = arith.addf %18, %17 : vector<8x128xf32>
    %c0_17 = arith.constant 0 : index
    %c0_18 = arith.constant 0 : index
    %20 = vector.load %arg8[%c0_17, %c0_18] : memref<8x128xf32, #tpu.memory_space<vmem>>, vector<8x128xf32>
    tpu.vector_store %arg8[%c0_17, %c0_18], %19 {strides = array<i32>} : memref<8x128xf32, #tpu.memory_space<vmem>>, vector<8x128xf32>,
    return
  }
  func.func @transform_0(%arg0: i32) -> (i32, i32) {
    %c0_i32 = arith.constant 0 : i32
    %c0_i32_0 = arith.constant 0 : i32
    return %arg0, %c0_i32 : i32, i32
  }
  func.func @transform_1(%arg0: i32) -> (i32, i32) {
    %c0_i32 = arith.constant 0 : i32
    %c0_i32_0 = arith.constant 0 : i32
    %c0_i32_1 = arith.constant 0 : i32
    return %c0_i32, %c0_i32_0 : i32, i32
  }
  func.func @transform_2(%arg0: i32) -> (i32, i32) {
    %c0_i32 = arith.constant 0 : i32
    %c0_i32_0 = arith.constant 0 : i32
    %c0_i32_1 = arith.constant 0 : i32
    return %c0_i32, %c0_i32_0 : i32, i32
  }
  func.func @transform_3(%arg0: i32) -> (i32, i32) {
    %c0_i32 = arith.constant 0 : i32
    %c0_i32_0 = arith.constant 0 : i32
    %c0_i32_1 = arith.constant 0 : i32
    return %c0_i32, %c0_i32_0 : i32, i32
  }
  func.func @transform_4(%arg0: i32) -> (i32, i32) {
    %c0_i32 = arith.constant 0 : i32
    %c0_i32_0 = arith.constant 0 : i32
    %c0_i32_1 = arith.constant 0 : i32
    return %c0_i32, %c0_i32_0 : i32, i32
  }
  func.func @transform_5(%arg0: i32) -> (i32, i32) {
    %c0_i32 = arith.constant 0 : i32
    %c0_i32_0 = arith.constant 0 : i32
    %c0_i32_1 = arith.constant 0 : i32
    return %c0_i32, %c0_i32_0 : i32, i32
  }
  func.func @transform_6(%arg0: i32) -> (i32, i32) {
    %c0_i32 = arith.constant 0 : i32
    %c0_i32_0 = arith.constant 0 : i32
    %c0_i32_1 = arith.constant 0 : i32
    return %c0_i32, %c0_i32_0 : i32, i32
  }
  func.func @transform_7(%arg0: i32) -> (i32, i32) {
    %c0_i32 = arith.constant 0 : i32
    %c0_i32_0 = arith.constant 0 : i32
    return %arg0, %c0_i32 : i32, i32
  }
}

</mosaic_0001>

<llo_original>
// kernel: tpu_custom_call.1
$region0: #{tpu_custom_call.1}
  #allocation0 [shape = 'u32[]', space=smem, size = 0x4, offset = 0x4, fixed_abs, tag = 'smem constant byte address 0x4 - core index']
  #allocation1 [shape = 'u32[72,128]{1,0:T(1,128)}', space=vmem, size = 0x9000, scoped, tag = 'internal scratch']
  %s0 = inlined_call_operand.hbm [shape: f32[8,128], index: 0, kind: input, shape index: {}]
  %s1 = inlined_call_operand.hbm [shape: f32[128,128], index: 1, kind: input, shape index: {}]
  %s2 = inlined_call_operand.vmem [shape: f32[1,128], index: 2, kind: input, shape index: {}]
  %s3 = inlined_call_operand.hbm [shape: f32[128,128], index: 3, kind: input, shape index: {}]
  %s4 = inlined_call_operand.vmem [shape: f32[1,128], index: 4, kind: input, shape index: {}]
  %s5 = inlined_call_operand.hbm [shape: f32[128,128], index: 5, kind: input, shape index: {}]
  %s6 = inlined_call_operand.vmem [shape: f32[1,128], index: 6, kind: input, shape index: {}]
  %s7 = inlined_call_operand.hbm [shape: f32[8,128], index: 7, kind: output, shape index: {}]
  %s8 = sld [smem:[#allocation0]]
  $region54: #{tpu_custom_call.1} parent=0
    _
  %s10 = ssub.s32 1, %s8
  %s11 = scalar_select 0, %s10, %s8
  $region1: #{tpu_custom_call.1} parent=0
    #allocation2 [shape = 'u8[4096]{0}', space=vmem, size = 0x1000, scoped, tag = 'input window, operand 0, single buffered']
    #allocation3 [shape = 's32[1]{0}', space=sflag, size = 0x4, scoped, tag = 'scoped memory for tpu_custom_call.1']
    #allocation4 [shape = 's32[1]{0}', space=sflag, size = 0x4, scoped, tag = 'scoped memory for tpu_custom_call.1']
    #allocation5 [shape = 'u8[65536]{0}', space=vmem, size = 0x10000, scoped, tag = 'input window, operand 1, single buffered']
    #allocation6 [shape = 's32[1]{0}', space=sflag, size = 0x4, scoped, tag = 'scoped memory for tpu_custom_call.1']
    #allocation7 [shape = 'u8[65536]{0}', space=vmem, size = 0x10000, scoped, tag = 'input window, operand 3, single buffered']
    #allocation8 [shape = 'u8[65536]{0}', space=vmem, size = 0x10000, scoped, tag = 'input window, operand 5, single buffered']
    #allocation9 [shape = 's32[1]{0}', space=sflag, size = 0x4, scoped, tag = 'scoped memory for tpu_custom_call.1']
    #allocation10 [shape = 'u8[4096]{0}', space=vmem, size = 0x1000, scoped, tag = 'output window, operand 0, single buffered']
    %12 = vsyncpa [#allocation3], 0
    %13 = vsyncpa [#allocation6], 0
    %14 = vsyncpa [#allocation9], 0
    %15 = vsyncpa [#allocation4], 0
    // Predicated region
    $region2: #{tpu_custom_call.1} parent=1 // pred_check
      _
    $region3: #{tpu_custom_call.1} parent=1 // pred_check_branch
      %17 = sbr.rel (0) target = $region5
    $region4: #{tpu_custom_call.1} parent=1 // pred_region
      %19 = vsyncadd [#allocation3], 0
      %s21 = sshll.u32 %s0, 4
      %s22 = int_to_ptr.hbm [resolvable:$true] %s21
      %s23 = sshll.u32 [#allocation2], 4
      %s24 = int_to_ptr.vmem [resolvable:$true] %s23
      %26 = dma.hbm_to_vmem [thread:$0]  %s22, 128, %s24, [#allocation3]
    $region5: #{tpu_custom_call.1} parent=1 // pred_fallthru
      _
    // Predicated region
    $region6: #{tpu_custom_call.1} parent=1 // pred_check
      _
    $region7: #{tpu_custom_call.1} parent=1 // pred_check_branch
      %28 = sbr.rel (0) target = $region9
    $region8: #{tpu_custom_call.1} parent=1 // pred_region
      %30 = vsyncadd [#allocation6], 0
      %s31 = sshll.u32 %s1, 4
      %s32 = int_to_ptr.hbm [resolvable:$true] %s31
      %s33 = sshll.u32 [#allocation5], 4
      %s34 = int_to_ptr.vmem [resolvable:$true] %s33
      %39 = dma.hbm_to_vmem [thread:$0]  %s32, 2048, %s34, [#allocation6], 128, 128, 8
    $region9: #{tpu_custom_call.1} parent=1 // pred_fallthru
      _
    // Predicated region
    $region10: #{tpu_custom_call.1} parent=1 // pred_check
      _
    $region11: #{tpu_custom_call.1} parent=1 // pred_check_branch
      %41 = sbr.rel (0) target = $region13
    $region12: #{tpu_custom_call.1} parent=1 // pred_region
      _
    $region13: #{tpu_custom_call.1} parent=1 // pred_fallthru
      _
    // Predicated region
    $region14: #{tpu_custom_call.1} parent=1 // pred_check
      _
    $region15: #{tpu_custom_call.1} parent=1 // pred_check_branch
      %43 = sbr.rel (0) target = $region17
    $region16: #{tpu_custom_call.1} parent=1 // pred_region
      %45 = vsyncadd [#allocation6], 0
      %s46 = sshll.u32 %s3, 4
      %s47 = int_to_ptr.hbm [resolvable:$true] %s46
      %s48 = sshll.u32 [#allocation7], 4
      %s49 = int_to_ptr.vmem [resolvable:$true] %s48
      %54 = dma.hbm_to_vmem [thread:$0]  %s47, 2048, %s49, [#allocation6], 128, 128, 8
    $region17: #{tpu_custom_call.1} parent=1 // pred_fallthru
      _
    // Predicated region
    $region18: #{tpu_custom_call.1} parent=1 // pred_check
      _
    $region19: #{tpu_custom_call.1} parent=1 // pred_check_branch
      %56 = sbr.rel (0) target = $region21
    $region20: #{tpu_custom_call.1} parent=1 // pred_region
      _
    $region21: #{tpu_custom_call.1} parent=1 // pred_fallthru
      _
    // Predicated region
    $region22: #{tpu_custom_call.1} parent=1 // pred_check
      _
    $region23: #{tpu_custom_call.1} parent=1 // pred_check_branch
      %58 = sbr.rel (0) target = $region25
    $region24: #{tpu_custom_call.1} parent=1 // pred_region
      %60 = vsyncadd [#allocation9], 0
      %s61 = sshll.u32 %s5, 4
      %s62 = int_to_ptr.hbm [resolvable:$true] %s61
      %s63 = sshll.u32 [#allocation8], 4
      %s64 = int_to_ptr.vmem [resolvable:$true] %s63
      %69 = dma.hbm_to_vmem [thread:$0]  %s62, 2048, %s64, [#allocation9], 128, 128, 8
    $region25: #{tpu_custom_call.1} parent=1 // pred_fallthru
      _
    // Predicated region
    $region26: #{tpu_custom_call.1} parent=1 // pred_check
      _
    $region27: #{tpu_custom_call.1} parent=1 // pred_check_branch
      %71 = sbr.rel (0) target = $region29
    $region28: #{tpu_custom_call.1} parent=1 // pred_region
      _
    $region29: #{tpu_custom_call.1} parent=1 // pred_fallthru
      _
    // Predicated region
    $region30: #{tpu_custom_call.1} parent=1 // pred_check
      _
    $region31: #{tpu_custom_call.1} parent=1 // pred_check_branch
      %73 = sbr.rel (0) target = $region33
    $region32: #{tpu_custom_call.1} parent=1 // pred_region
      %75 = dma.done [#allocation3], 128
    $region33: #{tpu_custom_call.1} parent=1 // pred_fallthru
      _
    // Predicated region
    $region34: #{tpu_custom_call.1} parent=1 // pred_check
      _
    $region35: #{tpu_custom_call.1} parent=1 // pred_check_branch
      %77 = sbr.rel (0) target = $region37
    $region36: #{tpu_custom_call.1} parent=1 // pred_region
      %79 = dma.done [#allocation6], 2048
    $region37: #{tpu_custom_call.1} parent=1 // pred_fallthru
      _
    // Predicated region
    $region38: #{tpu_custom_call.1} parent=1 // pred_check
      _
    $region39: #{tpu_custom_call.1} parent=1 // pred_check_branch
      %81 = sbr.rel (0) target = $region41
    $region40: #{tpu_custom_call.1} parent=1 // pred_region
      %83 = dma.done [#allocation6], 2048
    $region41: #{tpu_custom_call.1} parent=1 // pred_fallthru
      _
    // Predicated region
    $region42: #{tpu_custom_call.1} parent=1 // pred_check
      _
    $region43: #{tpu_custom_call.1} parent=1 // pred_check_branch
      %85 = sbr.rel (0) target = $region45
    $region44: #{tpu_custom_call.1} parent=1 // pred_region
      %87 = dma.done [#allocation9], 2048
    $region45: #{tpu_custom_call.1} parent=1 // pred_fallthru
      _
    %v88 = vld [vmem:[#allocation2] sm:$0xff]
    %v89 = vld [vmem:[%s2] sm:$0x1]
    %v90 = vld [vmem:[#allocation5] sm:$0xff]
    %v91 = vld [vmem:[#allocation5 + $0x8] sm:$0xff]
    %v92 = vld [vmem:[#allocation5 + $0x10] sm:$0xff]
    %v93 = vld [vmem:[#allocation5 + $0x18] sm:$0xff]
    %v94 = vld [vmem:[#allocation5 + $0x20] sm:$0xff]
    %v95 = vld [vmem:[#allocation5 + $0x28] sm:$0xff]
    %v96 = vld [vmem:[#allocation5 + $0x30] sm:$0xff]
    %v97 = vld [vmem:[#allocation5 + $0x38] sm:$0xff]
    %v98 = vld [vmem:[#allocation5 + $0x40] sm:$0xff]
    %v99 = vld [vmem:[#allocation5 + $0x48] sm:$0xff]
    %v100 = vld [vmem:[#allocation5 + $0x50] sm:$0xff]
    %v101 = vld [vmem:[#allocation5 + $0x58] sm:$0xff]
    %v102 = vld [vmem:[#allocation5 + $0x60] sm:$0xff]
    %v103 = vld [vmem:[#allocation5 + $0x68] sm:$0xff]
    %v104 = vld [vmem:[#allocation5 + $0x70] sm:$0xff]
    %v105 = vld [vmem:[#allocation5 + $0x78] sm:$0xff]
    %106 = vmatpush.msra.mxu0 %v105
    %107 = vmatpush.msra.mxu0 %v104
    %108 = vmatpush.msra.mxu0 %v103
    %109 = vmatpush.msra.mxu0 %v102
    %110 = vmatpush.msra.mxu0 %v101
    %111 = vmatpush.msra.mxu0 %v100
    %112 = vmatpush.msra.mxu0 %v99
    %113 = vmatpush.msra.mxu0 %v98
    %114 = vmatpush.msra.mxu0 %v97
    %115 = vmatpush.msra.mxu0 %v96
    %116 = vmatpush.msra.mxu0 %v95
    %117 = vmatpush.msra.mxu0 %v94
    %118 = vmatpush.msra.mxu0 %v93
    %119 = vmatpush.msra.mxu0 %v92
    %120 = vmatpush.msra.mxu0 %v91
    %121 = vmatpush.msra.mxu0 %v90
    %122 = vmatmul.f32.gmra.mxu0 %v88
    %v123 = vpop.f32.mrf.mxu0
    %v124 = vadd.f32 0.0, %v123
    %125 = vdwg.mxu0
    %v127 = vperm.slane %v89, 0
    %v129 = vadd.f32 %v127, %v124
    %v130 = vmax.f32 %v129, 0.0
    %v131 = vld [vmem:[%s4] sm:$0x1]
    %v132 = vld [vmem:[#allocation7] sm:$0xff]
    %v133 = vld [vmem:[#allocation7 + $0x8] sm:$0xff]
    %v134 = vld [vmem:[#allocation7 + $0x10] sm:$0xff]
    %v135 = vld [vmem:[#allocation7 + $0x18] sm:$0xff]
    %v136 = vld [vmem:[#allocation7 + $0x20] sm:$0xff]
    %v137 = vld [vmem:[#allocation7 + $0x28] sm:$0xff]
    %v138 = vld [vmem:[#allocation7 + $0x30] sm:$0xff]
    %v139 = vld [vmem:[#allocation7 + $0x38] sm:$0xff]
    %v140 = vld [vmem:[#allocation7 + $0x40] sm:$0xff]
    %v141 = vld [vmem:[#allocation7 + $0x48] sm:$0xff]
    %v142 = vld [vmem:[#allocation7 + $0x50] sm:$0xff]
    %v143 = vld [vmem:[#allocation7 + $0x58] sm:$0xff]
    %v144 = vld [vmem:[#allocation7 + $0x60] sm:$0xff]
    %v145 = vld [vmem:[#allocation7 + $0x68] sm:$0xff]
    %v146 = vld [vmem:[#allocation7 + $0x70] sm:$0xff]
    %v147 = vld [vmem:[#allocation7 + $0x78] sm:$0xff]
    %148 = vmatpush.msra.mxu0 %v147
    %149 = vmatpush.msra.mxu0 %v146
    %150 = vmatpush.msra.mxu0 %v145
    %151 = vmatpush.msra.mxu0 %v144
    %152 = vmatpush.msra.mxu0 %v143
    %153 = vmatpush.msra.mxu0 %v142
    %154 = vmatpush.msra.mxu0 %v141
    %155 = vmatpush.msra.mxu0 %v140
    %156 = vmatpush.msra.mxu0 %v139
    %157 = vmatpush.msra.mxu0 %v138
    %158 = vmatpush.msra.mxu0 %v137
    %159 = vmatpush.msra.mxu0 %v136
    %160 = vmatpush.msra.mxu0 %v135
    %161 = vmatpush.msra.mxu0 %v134
    %162 = vmatpush.msra.mxu0 %v133
    %163 = vmatpush.msra.mxu0 %v132
    %164 = vmatmul.f32.gmra.mxu0 %v130
    %v165 = vpop.f32.mrf.mxu0
    %v166 = vadd.f32 0.0, %v165
    %167 = vdwg.mxu0
    %v169 = vperm.slane %v131, 0
    %v171 = vadd.f32 %v169, %v166
    %v172 = vmax.f32 %v171, 0.0
    %v173 = vld [vmem:[%s6] sm:$0x1]
    %v174 = vld [vmem:[#allocation8] sm:$0xff]
    %v175 = vld [vmem:[#allocation8 + $0x8] sm:$0xff]
    %v176 = vld [vmem:[#allocation8 + $0x10] sm:$0xff]
    %v177 = vld [vmem:[#allocation8 + $0x18] sm:$0xff]
    %v178 = vld [vmem:[#allocation8 + $0x20] sm:$0xff]
    %v179 = vld [vmem:[#allocation8 + $0x28] sm:$0xff]
    %v180 = vld [vmem:[#allocation8 + $0x30] sm:$0xff]
    %v181 = vld [vmem:[#allocation8 + $0x38] sm:$0xff]
    %v182 = vld [vmem:[#allocation8 + $0x40] sm:$0xff]
    %v183 = vld [vmem:[#allocation8 + $0x48] sm:$0xff]
    %v184 = vld [vmem:[#allocation8 + $0x50] sm:$0xff]
    %v185 = vld [vmem:[#allocation8 + $0x58] sm:$0xff]
    %v186 = vld [vmem:[#allocation8 + $0x60] sm:$0xff]
    %v187 = vld [vmem:[#allocation8 + $0x68] sm:$0xff]
    %v188 = vld [vmem:[#allocation8 + $0x70] sm:$0xff]
    %v189 = vld [vmem:[#allocation8 + $0x78] sm:$0xff]
    %190 = vmatpush.msra.mxu0 %v189
    %191 = vmatpush.msra.mxu0 %v188
    %192 = vmatpush.msra.mxu0 %v187
    %193 = vmatpush.msra.mxu0 %v186
    %194 = vmatpush.msra.mxu0 %v185
    %195 = vmatpush.msra.mxu0 %v184
    %196 = vmatpush.msra.mxu0 %v183
    %197 = vmatpush.msra.mxu0 %v182
    %198 = vmatpush.msra.mxu0 %v181
    %199 = vmatpush.msra.mxu0 %v180
    %200 = vmatpush.msra.mxu0 %v179
    %201 = vmatpush.msra.mxu0 %v178
    %202 = vmatpush.msra.mxu0 %v177
    %203 = vmatpush.msra.mxu0 %v176
    %204 = vmatpush.msra.mxu0 %v175
    %205 = vmatpush.msra.mxu0 %v174
    %206 = vmatmul.f32.gmra.mxu0 %v172
    %v207 = vpop.f32.mrf.mxu0
    %v208 = vadd.f32 0.0, %v207
    %209 = vdwg.mxu0
    %v211 = vperm.slane %v173, 0
    %v213 = vadd.f32 %v211, %v208
    %214 = vst [vmem:[#allocation10] sm:$0xff] %v213
    // Predicated region
    $region46: #{tpu_custom_call.1} parent=1 // pred_check
      _
    $region47: #{tpu_custom_call.1} parent=1 // pred_check_branch
      %216 = sbr.rel (0) target = $region49
    $region48: #{tpu_custom_call.1} parent=1 // pred_region
      %218 = vsyncadd [#allocation4], 0
      %s220 = sshll.u32 [#allocation10], 4
      %s221 = int_to_ptr.vmem [resolvable:$true] %s220
      %s222 = sshll.u32 %s7, 4
      %s223 = int_to_ptr.hbm [resolvable:$true] %s222
      %225 = dma.vmem_to_hbm [thread:$0]  %s221, 128, %s223, [#allocation4]
    $region49: #{tpu_custom_call.1} parent=1 // pred_fallthru
      _
    // Predicated region
    $region50: #{tpu_custom_call.1} parent=1 // pred_check
      _
    $region51: #{tpu_custom_call.1} parent=1 // pred_check_branch
      %227 = sbr.rel (0) target = $region53
    $region52: #{tpu_custom_call.1} parent=1 // pred_region
      %229 = dma.done [#allocation4], 128
    $region53: #{tpu_custom_call.1} parent=1 // pred_fallthru
      _
    %230 = vsyncpa [#allocation3], 1
    %231 = vsyncpa [#allocation6], 1
    %232 = vsyncpa [#allocation9], 1
    %233 = vsyncpa [#allocation4], 1

</llo_original>
